<compile_context>
chip_gen: v5e
topology: v5e:2x2
jax: 0.10.0
libtpu: 0.0.40
codegen_flags: <defaults>
</compile_context>

<pallas_src>
import functools

import jax
import jax.numpy as jnp
from jax import lax
from jax.experimental import pallas as pl
from jax.experimental.pallas import tpu as pltpu

LN_EPS = 1e-5                      # torch.nn.LayerNorm default
_VMEM_TILE_BUDGET = 24 * 1024 * 1024   # fits every generation (v7x: 64 MiB phys)


def _cdiv(a, b):
    return -(-a // b)


def _round_up(n, m):
    return _cdiv(n, m) * m


def _choose_row_tile(n_rows, channels, row_tile, act_itemsize):
    """Pick the per-step row tile (static, trace-time Python)."""
    if row_tile is None:
        row_tile = 2048 if channels <= 128 else (1024 if channels <= 256 else 512)

    # >=2 (and even) grid steps with balanced real rows, so v7x's two
    # TensorCores both get work; harmless on 1-TC chips (v5e/v6e).
    steps = _cdiv(n_rows, row_tile)
    if n_rows > 8:
        steps = max(2, steps)
        if steps % 2:
            steps += 1
    rt = _cdiv(n_rows, steps)

    rt8 = max(8, _round_up(rt, 8))
    rt256 = _round_up(rt, 256)
    # Prefer a multiple of 256 (full-height MXU passes) unless it changes the
    # number of grid steps (which would unbalance the two-core split).
    rt = rt256 if (rt >= 256 and _cdiv(n_rows, rt256) == _cdiv(n_rows, rt8)) else rt8

    # Clamp so double-buffered x/out tiles + resident weights fit the budget.
    weights_vmem = 2 * (3 * channels * channels * 2 + 5 * channels * 4)
    row_bytes = 4 * channels * act_itemsize        # (in + out) x double-buffer
    max_rt = max(8, ((_VMEM_TILE_BUDGET - weights_vmem) // row_bytes) // 8 * 8)
    return min(rt, max_rt)


def _ipa_transition_kernel(x_ref, g_ref, beta_ref,
                           w1_ref, b1_ref, w2_ref, b2_ref, w3_ref, b3_ref,
                           o_ref):
    c = x_ref.shape[-1]
    inv_c = 1.0 / float(c)

    # ---- LayerNorm over the channel (last) axis, f32 statistics ----
    x = x_ref[...].astype(jnp.float32)                       # (TM, C)
    s = jnp.sum(x, axis=-1, keepdims=True)
    ss = jnp.sum(x * x, axis=-1, keepdims=True)
    mean = s * inv_c
    var = jnp.maximum(ss * inv_c - mean * mean, 0.0)          # clamp: no NaN
    xn = (x - mean) * lax.rsqrt(var + LN_EPS)
    xn = xn * g_ref[...] + beta_ref[...]                      # gamma/beta f32

    # ---- trans = Linear -> ReLU -> Linear -> ReLU -> Linear ----
    # bf16 MXU operands, f32 accumulation; biases added in f32.
    h = jnp.dot(xn.astype(jnp.bfloat16), w1_ref[...],
                preferred_element_type=jnp.float32) + b1_ref[...]
    h = jnp.maximum(h, 0.0)
    h = jnp.dot(h.astype(jnp.bfloat16), w2_ref[...],
                preferred_element_type=jnp.float32) + b2_ref[...]
    h = jnp.maximum(h, 0.0)
    h = jnp.dot(h.astype(jnp.bfloat16), w3_ref[...],
                preferred_element_type=jnp.float32) + b3_ref[...]

    # ---- residual: out = ln(x) + trans(ln(x)) ----
    o_ref[...] = (xn + h).astype(o_ref.dtype)


@functools.partial(jax.jit, static_argnames=("row_tile",))
def ipa_transition(x, params, *, row_tile=None):
    """x: [..., C] (f32 or bf16); params: output of prepare_params()."""
    C = x.shape[-1]
    lead = x.shape[:-1]
    x2d = x.reshape(-1, C)
    N = x2d.shape[0]
    itemsize = x2d.dtype.itemsize

    rt = _choose_row_tile(N, C, row_tile, itemsize)
    grid = _cdiv(N, rt)          # ragged last block: Pallas masks OOB writes

    row_spec = pl.BlockSpec((rt, C), lambda i: (i, 0))
    vec_spec = pl.BlockSpec((1, C), lambda i: (0, 0))        # grid-invariant
    mat_spec = pl.BlockSpec((C, C), lambda i: (0, 0))        # grid-invariant

    weights_vmem = 2 * (3 * C * C * 2 + 5 * C * 4)
    tiles_vmem = 4 * rt * C * itemsize
    vmem_limit = int(max(32 * 1024 * 1024,
                         min(48 * 1024 * 1024, 2 * (weights_vmem + tiles_vmem))))

    cost = pl.CostEstimate(
        flops=6 * N * C * C,                    # three (rt,C)x(C,C) GEMMs
        transcendentals=N,                      # rsqrt per row
        bytes_accessed=2 * N * C * itemsize + 3 * C * C * 2 + 5 * C * 4,
    )

    out2d = pl.pallas_call(
        _ipa_transition_kernel,
        out_shape=jax.ShapeDtypeStruct((N, C), x.dtype),
        grid_spec=pltpu.PrefetchScalarGridSpec(
            num_scalar_prefetch=0,
            grid=(grid,),
            in_specs=[
                row_spec,                    # x tile
                vec_spec, vec_spec,          # ln gamma, beta  (f32)
                mat_spec, vec_spec,          # w1 (bf16), b1 (f32)
                mat_spec, vec_spec,          # w2 (bf16), b2 (f32)
                mat_spec, vec_spec,          # w3 (bf16), b3 (f32)
            ],
            out_specs=row_spec,
        ),
        compiler_params=pltpu.CompilerParams(
            dimension_semantics=("parallel",),
            vmem_limit_bytes=vmem_limit),
        cost_estimate=cost,
    )(
        x2d,
        params["ln_gamma"], params["ln_beta"],
        params["w1"], params["b1"],
        params["w2"], params["b2"],
        params["w3"], params["b3"],
    )

    return out2d.reshape(*lead, C)


def init_params(key, channels):
    """Deterministic synthetic parameters in torch layout (f32)."""
    ks = jax.random.split(key, 6)
    scale = 1.0 / jnp.sqrt(channels)

    def lin(kw, kb):
        w = jax.random.uniform(kw, (channels, channels), jnp.float32,
                               -scale, scale)          # torch: [out, in]
        b = jax.random.uniform(kb, (channels,), jnp.float32, -scale, scale)
        return w, b

    w1, b1 = lin(ks[0], ks[1])
    w2, b2 = lin(ks[2], ks[3])
    w3, b3 = lin(ks[4], ks[5])
    return dict(
        ln_gamma=jnp.ones((channels,), jnp.float32),
        ln_beta=jnp.zeros((channels,), jnp.float32),
        w1=w1, b1=b1, w2=w2, b2=b2, w3=w3, b3=b3,
    )


def prepare_params(raw):
    """ONE-TIME conversion (call outside jit): torch-layout f32 -> kernel
    layout.  Weights become transposed [C_in, C_out] bf16 so no per-call
    convert op runs on the forward path; LN params / biases stay f32."""
    def w(t):
        return jnp.asarray(t, jnp.float32).T.astype(jnp.bfloat16)

    def v(t):
        return jnp.asarray(t, jnp.float32).reshape(1, -1)

    return dict(
        ln_gamma=v(raw["ln_gamma"]), ln_beta=v(raw["ln_beta"]),
        w1=w(raw["w1"]), b1=v(raw["b1"]),
        w2=w(raw["w2"]), b2=v(raw["b2"]),
        w3=w(raw["w3"]), b3=v(raw["b3"]),
    )


def _reference(x, p):
    """Pure-JAX reference mirroring the PyTorch forward (bf16 GEMM operands,
    f32 accumulation, to match the kernel's MXU precision)."""
    x = x.astype(jnp.float32)
    mean = jnp.mean(x, axis=-1, keepdims=True)
    var = jnp.maximum(jnp.mean(x * x, axis=-1, keepdims=True) - mean * mean, 0.0)
    xn = (x - mean) * lax.rsqrt(var + LN_EPS)
    xn = xn * p["ln_gamma"][0] + p["ln_beta"][0]

    def lin(a, w, b):
        return jnp.dot(a.astype(jnp.bfloat16), w,
                       preferred_element_type=jnp.float32) + b[0]

    h = jnp.maximum(lin(xn, p["w1"], p["b1"]), 0.0)
    h = jnp.maximum(lin(h, p["w2"], p["b2"]), 0.0)
    h = lin(h, p["w3"], p["b3"])
    return xn + h


if __name__ == "__main__":
    key = jax.random.PRNGKey(0)
    k_x1, k_p1, k_x2, k_p2, k_x3 = jax.random.split(key, 5)

    # Case 1: small module-like shapes, f32, rows split evenly across 2 steps.
    x1 = jax.random.normal(k_x1, (2, 8, 128), jnp.float32)
    p1 = prepare_params(init_params(k_p1, 128))       # one-time bf16 cast
    o1 = jax.block_until_ready(ipa_transition(x1, p1))
    r1 = _reference(x1.reshape(-1, 128), p1).reshape(x1.shape)
    assert o1.shape == x1.shape and o1.dtype == x1.dtype
    assert jnp.allclose(o1, r1, atol=2e-2, rtol=2e-2), "case1 mismatch"

    # Case 2: row count 3*7=21 not a multiple of the tile -> ragged last block
    # handled by Pallas OOB-write masking (no wrapper pad copy).
    x2 = jax.random.normal(k_x2, (3, 7, 256), jnp.float32)
    p2 = prepare_params(init_params(k_p2, 256))
    o2 = jax.block_until_ready(ipa_transition(x2, p2))
    r2 = _reference(x2.reshape(-1, 256), p2).reshape(x2.shape)
    assert o2.shape == x2.shape
    assert jnp.allclose(o2, r2, atol=2e-2, rtol=2e-2), "case2 mismatch"

    # Case 3: bf16 activation path (halved HBM row traffic, bf16 output).
    x3 = jax.random.normal(k_x3, (4, 16, 128), jnp.bfloat16)
    o3 = jax.block_until_ready(ipa_transition(x3, p1))
    assert o3.shape == x3.shape and o3.dtype == jnp.bfloat16
    r3 = _reference(x3.reshape(-1, 128), p1).reshape(x3.shape)
    assert jnp.allclose(o3.astype(jnp.float32), r3, atol=1.5e-1, rtol=5e-2), \
        "case3 mismatch"

    print("KERNEL_OK")
</pallas_src>

<mosaic_0001>
module attributes {stable_mosaic.version = 11 : i64} {
  func.func @_ipa_transition_kernel(%arg0: i32, %arg1: memref<8x128xf32, #tpu.memory_space<vmem>>, %arg2: memref<1x128xf32, #tpu.memory_space<vmem>>, %arg3: memref<1x128xf32, #tpu.memory_space<vmem>>, %arg4: memref<128x128xbf16, #tpu.memory_space<vmem>>, %arg5: memref<1x128xf32, #tpu.memory_space<vmem>>, %arg6: memref<128x128xbf16, #tpu.memory_space<vmem>>, %arg7: memref<1x128xf32, #tpu.memory_space<vmem>>, %arg8: memref<128x128xbf16, #tpu.memory_space<vmem>>, %arg9: memref<1x128xf32, #tpu.memory_space<vmem>>, %arg10: memref<8x128xf32, #tpu.memory_space<vmem>>) attributes {dimension_semantics = [#tpu.dimension_semantics<parallel>], iteration_bounds = array<i64: 2>, scalar_prefetch = 0 : i64, scratch_operands = 0 : i64, tpu.core_type = #tpu.core_type<tc>, window_params = [{transform_indices = @transform_0, window_bounds = array<i64: 8, 128>}, {pipeline_mode = #tpu.pipeline_mode<synchronous>, transform_indices = @transform_1, window_bounds = array<i64: 1, 128>}, {pipeline_mode = #tpu.pipeline_mode<synchronous>, transform_indices = @transform_2, window_bounds = array<i64: 1, 128>}, {pipeline_mode = #tpu.pipeline_mode<synchronous>, transform_indices = @transform_3, window_bounds = array<i64: 128, 128>}, {pipeline_mode = #tpu.pipeline_mode<synchronous>, transform_indices = @transform_4, window_bounds = array<i64: 1, 128>}, {pipeline_mode = #tpu.pipeline_mode<synchronous>, transform_indices = @transform_5, window_bounds = array<i64: 128, 128>}, {pipeline_mode = #tpu.pipeline_mode<synchronous>, transform_indices = @transform_6, window_bounds = array<i64: 1, 128>}, {pipeline_mode = #tpu.pipeline_mode<synchronous>, transform_indices = @transform_7, window_bounds = array<i64: 128, 128>}, {pipeline_mode = #tpu.pipeline_mode<synchronous>, transform_indices = @transform_8, window_bounds = array<i64: 1, 128>}, {transform_indices = @transform_9, window_bounds = array<i64: 8, 128>}]} {
    %c0 = arith.constant 0 : index
    %c0_0 = arith.constant 0 : index
    %0 = vector.load %arg1[%c0, %c0_0] : memref<8x128xf32, #tpu.memory_space<vmem>>, vector<8x128xf32>
    %cst = arith.constant dense<0.000000e+00> : vector<8xf32>
    %1 = vector.multi_reduction <add>, %0, %cst [1] : vector<8x128xf32> to vector<8xf32>
    %2 = vector.shape_cast %1 : vector<8xf32> to vector<8x1xf32>
    %3 = arith.mulf %0, %0 : vector<8x128xf32>
    %cst_1 = arith.constant dense<0.000000e+00> : vector<8xf32>
    %4 = vector.multi_reduction <add>, %3, %cst_1 [1] : vector<8x128xf32> to vector<8xf32>
    %5 = vector.shape_cast %4 : vector<8xf32> to vector<8x1xf32>
    %cst_2 = arith.constant 7.812500e-03 : f32
    %6 = vector.broadcast %cst_2 : f32 to vector<8x1xf32>
    %7 = arith.mulf %2, %6 : vector<8x1xf32>
    %cst_3 = arith.constant 7.812500e-03 : f32
    %8 = vector.broadcast %cst_3 : f32 to vector<8x1xf32>
    %9 = arith.mulf %5, %8 : vector<8x1xf32>
    %10 = arith.mulf %7, %7 : vector<8x1xf32>
    %11 = arith.subf %9, %10 : vector<8x1xf32>
    %cst_4 = arith.constant 0.000000e+00 : f32
    %12 = vector.broadcast %cst_4 : f32 to vector<8x1xf32>
    %13 = arith.maximumf %11, %12 : vector<8x1xf32>
    %14 = vector.broadcast %7 : vector<8x1xf32> to vector<8x128xf32>
    %15 = arith.subf %0, %14 : vector<8x128xf32>
    %cst_5 = arith.constant 9.99999974E-6 : f32
    %16 = vector.broadcast %cst_5 : f32 to vector<8x1xf32>
    %17 = arith.addf %13, %16 : vector<8x1xf32>
    %18 = math.rsqrt %17 : vector<8x1xf32>
    %19 = vector.broadcast %18 : vector<8x1xf32> to vector<8x128xf32>
    %20 = arith.mulf %15, %19 : vector<8x128xf32>
    %c0_6 = arith.constant 0 : index
    %c0_7 = arith.constant 0 : index
    %21 = vector.load %arg2[%c0_6, %c0_7] : memref<1x128xf32, #tpu.memory_space<vmem>>, vector<1x128xf32>
    %22 = vector.broadcast %21 : vector<1x128xf32> to vector<8x128xf32>
    %23 = arith.mulf %20, %22 : vector<8x128xf32>
    %c0_8 = arith.constant 0 : index
    %c0_9 = arith.constant 0 : index
    %24 = vector.load %arg3[%c0_8, %c0_9] : memref<1x128xf32, #tpu.memory_space<vmem>>, vector<1x128xf32>
    %25 = vector.broadcast %24 : vector<1x128xf32> to vector<8x128xf32>
    %26 = arith.addf %23, %25 : vector<8x128xf32>
    %27 = arith.truncf %26 : vector<8x128xf32> to vector<8x128xbf16>
    %c0_10 = arith.constant 0 : index
    %c0_11 = arith.constant 0 : index
    %28 = vector.load %arg4[%c0_10, %c0_11] : memref<128x128xbf16, #tpu.memory_space<vmem>>, vector<128x128xbf16>
    %cst_12 = arith.constant dense<0.000000e+00> : vector<8x128xf32>
    %29 = tpu.matmul %27, %28, %cst_12 {dimension_numbers = #tpu.dot_dimension_numbers<[1], [0], [0], [1], [0, 0, 1, 1], [], []>} : vector<8x128xbf16>, vector<128x128xbf16>, vector<8x128xf32> -> vector<8x128xf32>
    %c0_13 = arith.constant 0 : index
    %c0_14 = arith.constant 0 : index
    %30 = vector.load %arg5[%c0_13, %c0_14] : memref<1x128xf32, #tpu.memory_space<vmem>>, vector<1x128xf32>
    %31 = vector.broadcast %30 : vector<1x128xf32> to vector<8x128xf32>
    %32 = arith.addf %29, %31 : vector<8x128xf32>
    %cst_15 = arith.constant 0.000000e+00 : f32
    %33 = vector.broadcast %cst_15 : f32 to vector<8x128xf32>
    %34 = arith.maximumf %32, %33 : vector<8x128xf32>
    %35 = arith.truncf %34 : vector<8x128xf32> to vector<8x128xbf16>
    %c0_16 = arith.constant 0 : index
    %c0_17 = arith.constant 0 : index
    %36 = vector.load %arg6[%c0_16, %c0_17] : memref<128x128xbf16, #tpu.memory_space<vmem>>, vector<128x128xbf16>
    %cst_18 = arith.constant dense<0.000000e+00> : vector<8x128xf32>
    %37 = tpu.matmul %35, %36, %cst_18 {dimension_numbers = #tpu.dot_dimension_numbers<[1], [0], [0], [1], [0, 0, 1, 1], [], []>} : vector<8x128xbf16>, vector<128x128xbf16>, vector<8x128xf32> -> vector<8x128xf32>
    %c0_19 = arith.constant 0 : index
    %c0_20 = arith.constant 0 : index
    %38 = vector.load %arg7[%c0_19, %c0_20] : memref<1x128xf32, #tpu.memory_space<vmem>>, vector<1x128xf32>
    %39 = vector.broadcast %38 : vector<1x128xf32> to vector<8x128xf32>
    %40 = arith.addf %37, %39 : vector<8x128xf32>
    %cst_21 = arith.constant 0.000000e+00 : f32
    %41 = vector.broadcast %cst_21 : f32 to vector<8x128xf32>
    %42 = arith.maximumf %40, %41 : vector<8x128xf32>
    %43 = arith.truncf %42 : vector<8x128xf32> to vector<8x128xbf16>
    %c0_22 = arith.constant 0 : index
    %c0_23 = arith.constant 0 : index
    %44 = vector.load %arg8[%c0_22, %c0_23] : memref<128x128xbf16, #tpu.memory_space<vmem>>, vector<128x128xbf16>
    %cst_24 = arith.constant dense<0.000000e+00> : vector<8x128xf32>
    %45 = tpu.matmul %43, %44, %cst_24 {dimension_numbers = #tpu.dot_dimension_numbers<[1], [0], [0], [1], [0, 0, 1, 1], [], []>} : vector<8x128xbf16>, vector<128x128xbf16>, vector<8x128xf32> -> vector<8x128xf32>
    %c0_25 = arith.constant 0 : index
    %c0_26 = arith.constant 0 : index
    %46 = vector.load %arg9[%c0_25, %c0_26] : memref<1x128xf32, #tpu.memory_space<vmem>>, vector<1x128xf32>
    %47 = vector.broadcast %46 : vector<1x128xf32> to vector<8x128xf32>
    %48 = arith.addf %45, %47 : vector<8x128xf32>
    %49 = arith.addf %26, %48 : vector<8x128xf32>
    %c0_27 = arith.constant 0 : index
    %c0_28 = arith.constant 0 : index
    %50 = vector.load %arg10[%c0_27, %c0_28] : memref<8x128xf32, #tpu.memory_space<vmem>>, vector<8x128xf32>
    tpu.vector_store %arg10[%c0_27, %c0_28], %49 {strides = array<i32>} : memref<8x128xf32, #tpu.memory_space<vmem>>, vector<8x128xf32>,
    return
  }
  func.func @transform_0(%arg0: i32) -> (i32, i32) {
    %c0_i32 = arith.constant 0 : i32
    %c0_i32_0 = arith.constant 0 : i32
    return %arg0, %c0_i32 : i32, i32
  }
  func.func @transform_1(%arg0: i32) -> (i32, i32) {
    %c0_i32 = arith.constant 0 : i32
    %c0_i32_0 = arith.constant 0 : i32
    %c0_i32_1 = arith.constant 0 : i32
    return %c0_i32, %c0_i32_0 : i32, i32
  }
  func.func @transform_2(%arg0: i32) -> (i32, i32) {
    %c0_i32 = arith.constant 0 : i32
    %c0_i32_0 = arith.constant 0 : i32
    %c0_i32_1 = arith.constant 0 : i32
    return %c0_i32, %c0_i32_0 : i32, i32
  }
  func.func @transform_3(%arg0: i32) -> (i32, i32) {
    %c0_i32 = arith.constant 0 : i32
    %c0_i32_0 = arith.constant 0 : i32
    %c0_i32_1 = arith.constant 0 : i32
    return %c0_i32, %c0_i32_0 : i32, i32
  }
  func.func @transform_4(%arg0: i32) -> (i32, i32) {
    %c0_i32 = arith.constant 0 : i32
    %c0_i32_0 = arith.constant 0 : i32
    %c0_i32_1 = arith.constant 0 : i32
    return %c0_i32, %c0_i32_0 : i32, i32
  }
  func.func @transform_5(%arg0: i32) -> (i32, i32) {
    %c0_i32 = arith.constant 0 : i32
    %c0_i32_0 = arith.constant 0 : i32
    %c0_i32_1 = arith.constant 0 : i32
    return %c0_i32, %c0_i32_0 : i32, i32
  }
  func.func @transform_6(%arg0: i32) -> (i32, i32) {
    %c0_i32 = arith.constant 0 : i32
    %c0_i32_0 = arith.constant 0 : i32
    %c0_i32_1 = arith.constant 0 : i32
    return %c0_i32, %c0_i32_0 : i32, i32
  }
  func.func @transform_7(%arg0: i32) -> (i32, i32) {
    %c0_i32 = arith.constant 0 : i32
    %c0_i32_0 = arith.constant 0 : i32
    %c0_i32_1 = arith.constant 0 : i32
    return %c0_i32, %c0_i32_0 : i32, i32
  }
  func.func @transform_8(%arg0: i32) -> (i32, i32) {
    %c0_i32 = arith.constant 0 : i32
    %c0_i32_0 = arith.constant 0 : i32
    %c0_i32_1 = arith.constant 0 : i32
    return %c0_i32, %c0_i32_0 : i32, i32
  }
  func.func @transform_9(%arg0: i32) -> (i32, i32) {
    %c0_i32 = arith.constant 0 : i32
    %c0_i32_0 = arith.constant 0 : i32
    return %arg0, %c0_i32 : i32, i32
  }
}

</mosaic_0001>

<llo_original>
// kernel: ipa_transition.1
$region0: #{ipa_transition.1}
  #allocation0 [shape = 'u32[]', space=smem, size = 0x4, offset = 0x4, fixed_abs, tag = 'smem constant byte address 0x4 - core index']
  #allocation1 [shape = 'u32[72,128]{1,0:T(1,128)}', space=vmem, size = 0x9000, scoped, tag = 'internal scratch']
  %s0 = inlined_call_operand.hbm [shape: f32[16,128], index: 0, kind: input, shape index: {}]
  %s1 = inlined_call_operand.vmem [shape: f32[1,128], index: 1, kind: input, shape index: {}]
  %s2 = inlined_call_operand.vmem [shape: f32[1,128], index: 2, kind: input, shape index: {}]
  %s3 = inlined_call_operand.hbm [shape: bf16[128,128], index: 3, kind: input, shape index: {}]
  %s4 = inlined_call_operand.hbm [shape: f32[1,128], index: 4, kind: input, shape index: {}]
  %s5 = inlined_call_operand.hbm [shape: bf16[128,128], index: 5, kind: input, shape index: {}]
  %s6 = inlined_call_operand.hbm [shape: f32[1,128], index: 6, kind: input, shape index: {}]
  %s7 = inlined_call_operand.hbm [shape: bf16[128,128], index: 7, kind: input, shape index: {}]
  %s8 = inlined_call_operand.vmem [shape: f32[1,128], index: 8, kind: input, shape index: {}]
  %s9 = inlined_call_operand.hbm [shape: f32[16,128], index: 9, kind: output, shape index: {}]
  %s10 = sld [smem:[#allocation0]]
  $region93: #{ipa_transition.1} parent=0
    _
  %s12 = ssub.s32 1, %s10
  %s13 = scalar_select 0, %s12, %s10
  $region1: #{ipa_transition.1} parent=0
    #allocation2 [shape = 'u8[8192]{0}', space=vmem, size = 0x2000, scoped, tag = 'input window, operand 0']
    #allocation3 [shape = 's32[2]{0}', space=sflag, size = 0x8, scoped, tag = 'scoped memory for ipa_transition.1']
    #allocation4 [shape = 's32[2]{0}', space=sflag, size = 0x8, scoped, tag = 'scoped memory for ipa_transition.1']
    #allocation5 [shape = 'u8[32768]{0}', space=vmem, size = 0x8000, scoped, tag = 'input window, operand 3, single buffered']
    #allocation6 [shape = 's32[1]{0}', space=sflag, size = 0x4, scoped, tag = 'scoped memory for ipa_transition.1']
    #allocation7 [shape = 'u8[512]{0}', space=vmem, size = 0x400, scoped, tag = 'input window, operand 4, single buffered']
    #allocation8 [shape = 'u8[32768]{0}', space=vmem, size = 0x8000, scoped, tag = 'input window, operand 5, single buffered']
    #allocation9 [shape = 's32[1]{0}', space=sflag, size = 0x4, scoped, tag = 'scoped memory for ipa_transition.1']
    #allocation10 [shape = 'u8[512]{0}', space=vmem, size = 0x400, scoped, tag = 'input window, operand 6, single buffered']
    #allocation11 [shape = 'u8[32768]{0}', space=vmem, size = 0x8000, scoped, tag = 'input window, operand 7, single buffered']
    #allocation12 [shape = 's32[1]{0}', space=sflag, size = 0x4, scoped, tag = 'scoped memory for ipa_transition.1']
    #allocation13 [shape = 'u8[8192]{0}', space=vmem, size = 0x2000, scoped, tag = 'output window, operand 0']
    %14 = vsyncpa [#allocation3], 0
    %s15 = scalar_lea.sflag [#allocation3], 1
    %16 = vsyncpa %s15, 0
    %17 = vsyncpa [#allocation6], 0
    %18 = vsyncpa [#allocation9], 0
    %19 = vsyncpa [#allocation12], 0
    %20 = vsyncpa [#allocation4], 0
    %s21 = scalar_lea.sflag [#allocation4], 1
    %22 = vsyncpa %s21, 0
    loop: start=0, step=1, limit=4
    $region2: #{ipa_transition.1} parent=1 // loop_pre_header
      _
    $region3: #{ipa_transition.1} parent=1 // loop_header
      %s24 = sphi 0, %s28
      %p25 = scmp.ge.s32.totalorder %s24, 4
      %s34 = sphi 0, %s36
      %s37 = sphi 0, %s34
      %s38 = sphi 0, %s37
      %s54 = sphi 0, %s38
      %s58 = sphi 0, %s58
      %s60 = sphi 0, %s58
      %s61 = sphi 0, %s60
      %s75 = sphi 0, %s61
      %s79 = sphi 0, %s79
      %s81 = sphi 0, %s79
      %s82 = sphi 0, %s81
      %s96 = sphi 0, %s82
      %s100 = sphi 0, %s100
      %s102 = sphi 0, %s100
      %s103 = sphi 0, %s102
      %s117 = sphi 0, %s103
      %s121 = sphi 0, %s121
      %s123 = sphi 0, %s121
      %s124 = sphi 0, %s123
      %s138 = sphi 0, %s124
      %s142 = sphi 0, %s142
      %s144 = sphi 0, %s142
      %s145 = sphi 0, %s144
      %s159 = sphi 0, %s145
      %s163 = sphi 0, %s163
      %s165 = sphi 0, %s163
      %s166 = sphi 0, %s165
      %s180 = sphi 0, %s166
      %s184 = sphi 0, %s184
      %s186 = sphi 0, %s184
      %s187 = sphi 0, %s186
      %s201 = sphi 0, %s187
      %s205 = sphi 0, %s205
      %s207 = sphi 0, %s205
      %s208 = sphi 0, %s207
      %s222 = sphi 0, %s208
      %s228 = sphi 0, %s230
      %s231 = sphi 0, %s228
      %s232 = sphi 0, %s231
      %s248 = sphi 0, %s232
    $region4: #{ipa_transition.1} parent=1 // loop_header_branch
      %27 = sbr.rel (%p25) target = $region8
    $region5: #{ipa_transition.1} parent=1 // loop_body
      %s29 = ssub.s32 %s24, 1
      %s30 = ssub.s32 %s24, 2
      %s31 = sadd.s32 %s24, 1
      %s32 = ssub.s32 %s24, %s31
      %p33 = scmp.eq.s32.totalorder %s32, 0
      %s35 = sadd.s32 %s34, 1
      %s36 = scalar_select %p33, %s34, %s35
      %p39 = pneg %p33
      %p40 = scmp.eq.s32.totalorder %s24, 1
      %p41 = por %p39, %p40
      %p42 = scmp.ne.s32.totalorder %s34, %s37
      %p43 = scmp.eq.s32.totalorder %s24, 0
      %p44 = por %p42, %p43
      %p45 = scmp.ne.s32.totalorder %s34, %s37
      %p46 = scmp.eq.s32.totalorder %s29, 1
      %p47 = por %p45, %p46
      %p48 = scmp.ne.s32.totalorder %s37, %s38
      %p49 = scmp.eq.s32.totalorder %s29, 0
      %p50 = por %p48, %p49
      %p51 = scmp.ne.s32.totalorder %s37, %s38
      %p52 = scmp.eq.s32.totalorder %s30, 1
      %p53 = por %p51, %p52
      %p55 = scmp.ne.s32.totalorder %s38, %s54
      %p56 = scmp.eq.s32.totalorder %s30, 0
      %p57 = por %p55, %p56
      %s59 = sadd.s32 %s58, 1
      %p62 = scmp.eq.s32.totalorder %s24, 1
      %p63 = scmp.ne.s32.totalorder %s58, %s60
      %p64 = scmp.eq.s32.totalorder %s24, 0
      %p65 = por %p63, %p64
      %p66 = scmp.ne.s32.totalorder %s58, %s60
      %p67 = scmp.eq.s32.totalorder %s29, 1
      %p68 = por %p66, %p67
      %p69 = scmp.ne.s32.totalorder %s60, %s61
      %p70 = scmp.eq.s32.totalorder %s29, 0
      %p71 = por %p69, %p70
      %p72 = scmp.ne.s32.totalorder %s60, %s61
      %p73 = scmp.eq.s32.totalorder %s30, 1
      %p74 = por %p72, %p73
      %p76 = scmp.ne.s32.totalorder %s61, %s75
      %p77 = scmp.eq.s32.totalorder %s30, 0
      %p78 = por %p76, %p77
      %s80 = sadd.s32 %s79, 1
      %p83 = scmp.eq.s32.totalorder %s24, 1
      %p84 = scmp.ne.s32.totalorder %s79, %s81
      %p85 = scmp.eq.s32.totalorder %s24, 0
      %p86 = por %p84, %p85
      %p87 = scmp.ne.s32.totalorder %s79, %s81
      %p88 = scmp.eq.s32.totalorder %s29, 1
      %p89 = por %p87, %p88
      %p90 = scmp.ne.s32.totalorder %s81, %s82
      %p91 = scmp.eq.s32.totalorder %s29, 0
      %p92 = por %p90, %p91
      %p93 = scmp.ne.s32.totalorder %s81, %s82
      %p94 = scmp.eq.s32.totalorder %s30, 1
      %p95 = por %p93, %p94
      %p97 = scmp.ne.s32.totalorder %s82, %s96
      %p98 = scmp.eq.s32.totalorder %s30, 0
      %p99 = por %p97, %p98
      %s101 = sadd.s32 %s100, 1
      %p104 = scmp.eq.s32.totalorder %s24, 1
      %p105 = scmp.ne.s32.totalorder %s100, %s102
      %p106 = scmp.eq.s32.totalorder %s24, 0
      %p107 = por %p105, %p106
      %p108 = scmp.ne.s32.totalorder %s100, %s102
      %p109 = scmp.eq.s32.totalorder %s29, 1
      %p110 = por %p108, %p109
      %p111 = scmp.ne.s32.totalorder %s102, %s103
      %p112 = scmp.eq.s32.totalorder %s29, 0
      %p113 = por %p111, %p112
      %p114 = scmp.ne.s32.totalorder %s102, %s103
      %p115 = scmp.eq.s32.totalorder %s30, 1
      %p116 = por %p114, %p115
      %p118 = scmp.ne.s32.totalorder %s103, %s117
      %p119 = scmp.eq.s32.totalorder %s30, 0
      %p120 = por %p118, %p119
      %s122 = sadd.s32 %s121, 1
      %p125 = scmp.eq.s32.totalorder %s24, 1
      %p126 = scmp.ne.s32.totalorder %s121, %s123
      %p127 = scmp.eq.s32.totalorder %s24, 0
      %p128 = por %p126, %p127
      %p129 = scmp.ne.s32.totalorder %s121, %s123
      %p130 = scmp.eq.s32.totalorder %s29, 1
      %p131 = por %p129, %p130
      %p132 = scmp.ne.s32.totalorder %s123, %s124
      %p133 = scmp.eq.s32.totalorder %s29, 0
      %p134 = por %p132, %p133
      %p135 = scmp.ne.s32.totalorder %s123, %s124
      %p136 = scmp.eq.s32.totalorder %s30, 1
      %p137 = por %p135, %p136
      %p139 = scmp.ne.s32.totalorder %s124, %s138
      %p140 = scmp.eq.s32.totalorder %s30, 0
      %p141 = por %p139, %p140
      %s143 = sadd.s32 %s142, 1
      %p146 = scmp.eq.s32.totalorder %s24, 1
      %p147 = scmp.ne.s32.totalorder %s142, %s144
      %p148 = scmp.eq.s32.totalorder %s24, 0
      %p149 = por %p147, %p148
      %p150 = scmp.ne.s32.totalorder %s142, %s144
      %p151 = scmp.eq.s32.totalorder %s29, 1
      %p152 = por %p150, %p151
      %p153 = scmp.ne.s32.totalorder %s144, %s145
      %p154 = scmp.eq.s32.totalorder %s29, 0
      %p155 = por %p153, %p154
      %p156 = scmp.ne.s32.totalorder %s144, %s145
      %p157 = scmp.eq.s32.totalorder %s30, 1
      %p158 = por %p156, %p157
      %p160 = scmp.ne.s32.totalorder %s145, %s159
      %p161 = scmp.eq.s32.totalorder %s30, 0
      %p162 = por %p160, %p161
      %s164 = sadd.s32 %s163, 1
      %p167 = scmp.eq.s32.totalorder %s24, 1
      %p168 = scmp.ne.s32.totalorder %s163, %s165
      %p169 = scmp.eq.s32.totalorder %s24, 0
      %p170 = por %p168, %p169
      %p171 = scmp.ne.s32.totalorder %s163, %s165
      %p172 = scmp.eq.s32.totalorder %s29, 1
      %p173 = por %p171, %p172
      %p174 = scmp.ne.s32.totalorder %s165, %s166
      %p175 = scmp.eq.s32.totalorder %s29, 0
      %p176 = por %p174, %p175
      %p177 = scmp.ne.s32.totalorder %s165, %s166
      %p178 = scmp.eq.s32.totalorder %s30, 1
      %p179 = por %p177, %p178
      %p181 = scmp.ne.s32.totalorder %s166, %s180
      %p182 = scmp.eq.s32.totalorder %s30, 0
      %p183 = por %p181, %p182
      %s185 = sadd.s32 %s184, 1
      %p188 = scmp.eq.s32.totalorder %s24, 1
      %p189 = scmp.ne.s32.totalorder %s184, %s186
      %p190 = scmp.eq.s32.totalorder %s24, 0
      %p191 = por %p189, %p190
      %p192 = scmp.ne.s32.totalorder %s184, %s186
      %p193 = scmp.eq.s32.totalorder %s29, 1
      %p194 = por %p192, %p193
      %p195 = scmp.ne.s32.totalorder %s186, %s187
      %p196 = scmp.eq.s32.totalorder %s29, 0
      %p197 = por %p195, %p196
      %p198 = scmp.ne.s32.totalorder %s186, %s187
      %p199 = scmp.eq.s32.totalorder %s30, 1
      %p200 = por %p198, %p199
      %p202 = scmp.ne.s32.totalorder %s187, %s201
      %p203 = scmp.eq.s32.totalorder %s30, 0
      %p204 = por %p202, %p203
      %s206 = sadd.s32 %s205, 1
      %p209 = scmp.eq.s32.totalorder %s24, 1
      %p210 = scmp.ne.s32.totalorder %s205, %s207
      %p211 = scmp.eq.s32.totalorder %s24, 0
      %p212 = por %p210, %p211
      %p213 = scmp.ne.s32.totalorder %s205, %s207
      %p214 = scmp.eq.s32.totalorder %s29, 1
      %p215 = por %p213, %p214
      %p216 = scmp.ne.s32.totalorder %s207, %s208
      %p217 = scmp.eq.s32.totalorder %s29, 0
      %p218 = por %p216, %p217
      %p219 = scmp.ne.s32.totalorder %s207, %s208
      %p220 = scmp.eq.s32.totalorder %s30, 1
      %p221 = por %p219, %p220
      %p223 = scmp.ne.s32.totalorder %s208, %s222
      %p224 = scmp.eq.s32.totalorder %s30, 0
      %p225 = por %p223, %p224
      %s226 = ssub.s32 %s24, %s31
      %p227 = scmp.eq.s32.totalorder %s226, 0
      %s229 = sadd.s32 %s228, 1
      %s230 = scalar_select %p227, %s228, %s229
      %p233 = pneg %p227
      %p234 = scmp.eq.s32.totalorder %s24, 1
      %p235 = por %p233, %p234
      %p236 = scmp.ne.s32.totalorder %s228, %s231
      %p237 = scmp.eq.s32.totalorder %s24, 0
      %p238 = por %p236, %p237
      %p239 = scmp.ne.s32.totalorder %s228, %s231
      %p240 = scmp.eq.s32.totalorder %s29, 1
      %p241 = por %p239, %p240
      %p242 = scmp.ne.s32.totalorder %s231, %s232
      %p243 = scmp.eq.s32.totalorder %s29, 0
      %p244 = por %p242, %p243
      %p245 = scmp.ne.s32.totalorder %s231, %s232
      %p246 = scmp.eq.s32.totalorder %s30, 1
      %p247 = por %p245, %p246
      %p249 = scmp.ne.s32.totalorder %s232, %s248
      %p250 = scmp.eq.s32.totalorder %s30, 0
      %p251 = por %p249, %p250
      %p252 = scmp.le.s32.totalorder 1, %s24
      %p253 = scmp.lt.s32.totalorder %s24, 3
      %p254 = pnand %p252, %p253
      %p255 = pneg %p254
      // Predicated region
      $region9: #{ipa_transition.1} parent=5 // pred_check
        _
      $region10: #{ipa_transition.1} parent=5 // pred_check_branch
        %257 = sbr.rel (%p254) target = $region12
      $region11: #{ipa_transition.1} parent=5 // pred_region
        %s258 = ssub.s32 %s24, 1
        // Predicated region
        $region13: #{ipa_transition.1} parent=11 // pred_check
          %p259 = pneg %p71
        $region14: #{ipa_transition.1} parent=11 // pred_check_branch
          %261 = sbr.rel (%p259) target = $region16
        $region15: #{ipa_transition.1} parent=11 // pred_region
          _
        $region16: #{ipa_transition.1} parent=11 // pred_fallthru
          _
        // Predicated region
        $region17: #{ipa_transition.1} parent=11 // pred_check
          %p262 = pneg %p92
        $region18: #{ipa_transition.1} parent=11 // pred_check_branch
          %264 = sbr.rel (%p262) target = $region20
        $region19: #{ipa_transition.1} parent=11 // pred_region
          _
        $region20: #{ipa_transition.1} parent=11 // pred_fallthru
          _
        // Predicated region
        $region21: #{ipa_transition.1} parent=11 // pred_check
          %p265 = pneg %p113
        $region22: #{ipa_transition.1} parent=11 // pred_check_branch
          %267 = sbr.rel (%p265) target = $region24
        $region23: #{ipa_transition.1} parent=11 // pred_region
          %269 = vsyncadd [#allocation6], 0
          %s270 = sshll.u32 %s3, 4
          %s271 = int_to_ptr.hbm [resolvable:$true] %s270
          %s272 = sshll.u32 [#allocation5], 4
          %s273 = int_to_ptr.vmem [resolvable:$true] %s272
          %278 = dma.hbm_to_vmem [thread:$0]  %s271, 1024, %s273, [#allocation6], 64, 64, 4
        $region24: #{ipa_transition.1} parent=11 // pred_fallthru
          _
        // Predicated region
        $region25: #{ipa_transition.1} parent=11 // pred_check
          %p279 = pneg %p134
        $region26: #{ipa_transition.1} parent=11 // pred_check_branch
          %281 = sbr.rel (%p279) target = $region28
        $region27: #{ipa_transition.1} parent=11 // pred_region
          %283 = vsyncadd [#allocation6], 0
          %s285 = sshll.u32 %s4, 4
          %s286 = int_to_ptr.hbm [resolvable:$true] %s285
          %s287 = sshll.u32 [#allocation7], 4
          %s288 = int_to_ptr.vmem [resolvable:$true] %s287
          %290 = dma.hbm_to_vmem [thread:$0]  %s286, 16, %s288, [#allocation6]
        $region28: #{ipa_transition.1} parent=11 // pred_fallthru
          _
        // Predicated region
        $region29: #{ipa_transition.1} parent=11 // pred_check
          %p291 = pneg %p155
        $region30: #{ipa_transition.1} parent=11 // pred_check_branch
          %293 = sbr.rel (%p291) target = $region32
        $region31: #{ipa_transition.1} parent=11 // pred_region
          %295 = vsyncadd [#allocation9], 0
          %s296 = sshll.u32 %s5, 4
          %s297 = int_to_ptr.hbm [resolvable:$true] %s296
          %s298 = sshll.u32 [#allocation8], 4
          %s299 = int_to_ptr.vmem [resolvable:$true] %s298
          %304 = dma.hbm_to_vmem [thread:$0]  %s297, 1024, %s299, [#allocation9], 64, 64, 4
        $region32: #{ipa_transition.1} parent=11 // pred_fallthru
          _
        // Predicated region
        $region33: #{ipa_transition.1} parent=11 // pred_check
          %p305 = pneg %p176
        $region34: #{ipa_transition.1} parent=11 // pred_check_branch
          %307 = sbr.rel (%p305) target = $region36
        $region35: #{ipa_transition.1} parent=11 // pred_region
          %309 = vsyncadd [#allocation9], 0
          %s311 = sshll.u32 %s6, 4
          %s312 = int_to_ptr.hbm [resolvable:$true] %s311
          %s313 = sshll.u32 [#allocation10], 4
          %s314 = int_to_ptr.vmem [resolvable:$true] %s313
          %316 = dma.hbm_to_vmem [thread:$0]  %s312, 16, %s314, [#allocation9]
        $region36: #{ipa_transition.1} parent=11 // pred_fallthru
          _
        // Predicated region
        $region37: #{ipa_transition.1} parent=11 // pred_check
          %p317 = pneg %p197
        $region38: #{ipa_transition.1} parent=11 // pred_check_branch
          %319 = sbr.rel (%p317) target = $region40
        $region39: #{ipa_transition.1} parent=11 // pred_region
          %321 = vsyncadd [#allocation12], 0
          %s322 = sshll.u32 %s7, 4
          %s323 = int_to_ptr.hbm [resolvable:$true] %s322
          %s324 = sshll.u32 [#allocation11], 4
          %s325 = int_to_ptr.vmem [resolvable:$true] %s324
          %330 = dma.hbm_to_vmem [thread:$0]  %s323, 1024, %s325, [#allocation12], 64, 64, 4
        $region40: #{ipa_transition.1} parent=11 // pred_fallthru
          _
        // Predicated region
        $region41: #{ipa_transition.1} parent=11 // pred_check
          %p331 = pneg %p218
        $region42: #{ipa_transition.1} parent=11 // pred_check_branch
          %333 = sbr.rel (%p331) target = $region44
        $region43: #{ipa_transition.1} parent=11 // pred_region
          _
        $region44: #{ipa_transition.1} parent=11 // pred_fallthru
          _
      $region12: #{ipa_transition.1} parent=5 // pred_fallthru
        _
      %p334 = scmp.lt.s32.totalorder %s24, 2
      // Predicated region
      $region45: #{ipa_transition.1} parent=5 // pred_check
        %p335 = pneg %p334
      $region46: #{ipa_transition.1} parent=5 // pred_check_branch
        %337 = sbr.rel (%p335) target = $region48
      $region47: #{ipa_transition.1} parent=5 // pred_region
        // Predicated region
        $region49: #{ipa_transition.1} parent=47 // pred_check
          %p338 = pneg %p44
        $region50: #{ipa_transition.1} parent=47 // pred_check_branch
          %340 = sbr.rel (%p338) target = $region52
        $region51: #{ipa_transition.1} parent=47 // pred_region
          %s341 = sand.u32 %s34, 1
          %s342 = scalar_lea.sflag [#allocation3], %s341
          %s343 = sand.u32 %s34, 1
          %s344 = smul.addr %s343, 8
          %s345 = scalar_lea.vmem [#allocation2], %s344
          %347 = vsyncadd %s342, 0
          %s348 = smul.addr %s24, 8
          %s349 = scalar_lea.hbm %s0, %s348
          %s351 = sshll.u32 %s349, 4
          %s352 = int_to_ptr.hbm [resolvable:$true] %s351
          %s353 = sshll.u32 %s345, 4
          %s354 = int_to_ptr.vmem [resolvable:$true] %s353
          %356 = dma.hbm_to_vmem [thread:$0]  %s352, 128, %s354, %s342
        $region52: #{ipa_transition.1} parent=47 // pred_fallthru
          _
      $region48: #{ipa_transition.1} parent=5 // pred_fallthru
        _
      %p357 = scmp.le.s32.totalorder 1, %s24
      %p358 = scmp.lt.s32.totalorder %s24, 3
      %p359 = pnand %p357, %p358
      %p360 = pneg %p359
      // Predicated region
      $region53: #{ipa_transition.1} parent=5 // pred_check
        _
      $region54: #{ipa_transition.1} parent=5 // pred_check_branch
        %362 = sbr.rel (%p359) target = $region56
      $region55: #{ipa_transition.1} parent=5 // pred_region
        %s363 = ssub.s32 %s24, 1
        %s364 = sand.u32 %s37, 1
        %s365 = scalar_lea.sflag [#allocation3], %s364
        %s366 = sand.u32 %s37, 1
        %s367 = smul.addr %s366, 8
        %s368 = scalar_lea.vmem [#allocation2], %s367
        // Predicated region
        $region57: #{ipa_transition.1} parent=55 // pred_check
          %p369 = pneg %p50
        $region58: #{ipa_transition.1} parent=55 // pred_check_branch
          %371 = sbr.rel (%p369) target = $region60
        $region59: #{ipa_transition.1} parent=55 // pred_region
          %373 = dma.done %s365, 128
        $region60: #{ipa_transition.1} parent=55 // pred_fallthru
          _
        // Predicated region
        $region61: #{ipa_transition.1} parent=55 // pred_check
          %p374 = pneg %p113
        $region62: #{ipa_transition.1} parent=55 // pred_check_branch
          %376 = sbr.rel (%p374) target = $region64
        $region63: #{ipa_transition.1} parent=55 // pred_region
          %378 = dma.done [#allocation6], 1024
        $region64: #{ipa_transition.1} parent=55 // pred_fallthru
          _
        // Predicated region
        $region65: #{ipa_transition.1} parent=55 // pred_check
          %p379 = pneg %p134
        $region66: #{ipa_transition.1} parent=55 // pred_check_branch
          %381 = sbr.rel (%p379) target = $region68
        $region67: #{ipa_transition.1} parent=55 // pred_region
          %383 = dma.done [#allocation6], 16
        $region68: #{ipa_transition.1} parent=55 // pred_fallthru
          _
        // Predicated region
        $region69: #{ipa_transition.1} parent=55 // pred_check
          %p384 = pneg %p155
        $region70: #{ipa_transition.1} parent=55 // pred_check_branch
          %386 = sbr.rel (%p384) target = $region72
        $region71: #{ipa_transition.1} parent=55 // pred_region
          %388 = dma.done [#allocation9], 1024
        $region72: #{ipa_transition.1} parent=55 // pred_fallthru
          _
        // Predicated region
        $region73: #{ipa_transition.1} parent=55 // pred_check
          %p389 = pneg %p176
        $region74: #{ipa_transition.1} parent=55 // pred_check_branch
          %391 = sbr.rel (%p389) target = $region76
        $region75: #{ipa_transition.1} parent=55 // pred_region
          %393 = dma.done [#allocation9], 16
        $region76: #{ipa_transition.1} parent=55 // pred_fallthru
          _
        // Predicated region
        $region77: #{ipa_transition.1} parent=55 // pred_check
          %p394 = pneg %p197
        $region78: #{ipa_transition.1} parent=55 // pred_check_branch
          %396 = sbr.rel (%p394) target = $region80
        $region79: #{ipa_transition.1} parent=55 // pred_region
          %398 = dma.done [#allocation12], 1024
        $region80: #{ipa_transition.1} parent=55 // pred_fallthru
          _
        %s399 = sand.u32 %s37, 1
        %s400 = scalar_lea.sflag [#allocation3], %s399
        %s401 = sand.u32 %s37, 1
        %s402 = smul.addr %s401, 8
        %s403 = scalar_lea.vmem [#allocation2], %s402
        %p404 = pneg %p50
        %p405 = pneg %p47
        %p406 = pneg %p71
        %p407 = pneg %p68
        %p408 = pneg %p92
        %p409 = pneg %p89
        %p410 = pneg %p113
        %p411 = pneg %p110
        %p412 = pneg %p134
        %p413 = pneg %p131
        %p414 = pneg %p155
        %p415 = pneg %p152
        %p416 = pneg %p176
        %p417 = pneg %p173
        %p418 = pneg %p197
        %p419 = pneg %p194
        %p420 = pneg %p218
        %p421 = pneg %p215
        %p422 = pneg %p244
        %p423 = pneg %p241
        %s424 = sand.u32 %s231, 1
        %s425 = scalar_lea.sflag [#allocation4], %s424
        %s426 = sand.u32 %s231, 1
        %s427 = smul.addr %s426, 8
        %s428 = scalar_lea.vmem [#allocation13], %s427
        %v429 = vld [vmem:[%s368] sm:$0xff]
        %430 = vadd.xlane.f32.xlu0 %v429
        %v431 = vpop.xlane.xlu0 %430
        %v432 = vmul.f32 %v429, %v429
        %433 = vadd.xlane.f32.xlu0 %v432
        %v434 = vpop.xlane.xlu0 %433
        %v435 = vmul.f32 %v431, 0.0078125
        %v436 = vmul.f32 %v434, 0.0078125
        %v437 = vmul.f32 %v435, %v435
        %v438 = vsub.f32 %v436, %v437
        %v439 = vmax.f32 %v438, 0.0
        %v440 = vsub.f32 %v429, %v435
        %v441 = vadd.f32 %v439, 1e-05
        %v442 = vrsqrt.pop %v441
        %v443 = vmul.f32 %v442, %v441
        %v444 = vmul.f32 %v443, %v442
        %v445 = vmul.f32 0.5, %v444
        %v446 = vsub.f32 1.5, %v445
        %v447 = vmul.f32 %v442, %v446
        %vm448 = vweird.f32 %v441
        %vm449 = vweird.f32 %v442
        %vm450 = vmor %vm448, %vm449
        %v451 = vsel %vm450, %v442, %v447
        %v452 = vmul.f32 %v440, %v451
        %v453 = vld [vmem:[%s1] sm:$0x1]
        %v455 = vperm.slane %v453, 0
        %v457 = vmul.f32 %v452, %v455
        %v458 = vld [vmem:[%s2] sm:$0x1]
        %v460 = vperm.slane %v458, 0
        %v462 = vadd.f32 %v457, %v460
        %v463 = vpack.c.bf16 %v462, %v462
        %v464 = vld [vmem:[#allocation5] sm:$0xf]
        %v465 = vld [vmem:[#allocation5 + $0x4] sm:$0xf]
        %v466 = vld [vmem:[#allocation5 + $0x8] sm:$0xf]
        %v467 = vld [vmem:[#allocation5 + $0xc] sm:$0xf]
        %v468 = vld [vmem:[#allocation5 + $0x10] sm:$0xf]
        %v469 = vld [vmem:[#allocation5 + $0x14] sm:$0xf]
        %v470 = vld [vmem:[#allocation5 + $0x18] sm:$0xf]
        %v471 = vld [vmem:[#allocation5 + $0x1c] sm:$0xf]
        %v472 = vld [vmem:[#allocation5 + $0x20] sm:$0xf]
        %v473 = vld [vmem:[#allocation5 + $0x24] sm:$0xf]
        %v474 = vld [vmem:[#allocation5 + $0x28] sm:$0xf]
        %v475 = vld [vmem:[#allocation5 + $0x2c] sm:$0xf]
        %v476 = vld [vmem:[#allocation5 + $0x30] sm:$0xf]
        %v477 = vld [vmem:[#allocation5 + $0x34] sm:$0xf]
        %v478 = vld [vmem:[#allocation5 + $0x38] sm:$0xf]
        %v479 = vld [vmem:[#allocation5 + $0x3c] sm:$0xf]
        %v480 = vld [vmem:[#allocation7] sm:$0x1]
        %v482 = vperm.slane %v480, 0
        %v500 = vunpack.c.l.b16 %v464
        %v501 = vunpack.c.l.b16 %v465
        %v502 = vunpack.c.l.b16 %v466
        %v503 = vunpack.c.l.b16 %v467
        %v504 = vunpack.c.l.b16 %v468
        %v505 = vunpack.c.l.b16 %v469
        %v506 = vunpack.c.l.b16 %v470
        %v507 = vunpack.c.l.b16 %v471
        %v508 = vunpack.c.l.b16 %v472
        %v509 = vunpack.c.l.b16 %v473
        %v510 = vunpack.c.l.b16 %v474
        %v511 = vunpack.c.l.b16 %v475
        %v512 = vunpack.c.l.b16 %v476
        %v513 = vunpack.c.l.b16 %v477
        %v514 = vunpack.c.l.b16 %v478
        %v515 = vunpack.c.l.b16 %v479
        %v516 = vpack.c.b16 %v501, %v500
        %v517 = vpack.c.b16 %v503, %v502
        %v518 = vpack.c.b16 %v505, %v504
        %v519 = vpack.c.b16 %v507, %v506
        %v520 = vpack.c.b16 %v509, %v508
        %v521 = vpack.c.b16 %v511, %v510
        %v522 = vpack.c.b16 %v513, %v512
        %v523 = vpack.c.b16 %v515, %v514
        %532 = vmatpush.bf16.msra.mxu0 %v523
        %533 = vmatpush.bf16.msra.mxu0 %v522
        %534 = vmatpush.bf16.msra.mxu0 %v521
        %535 = vmatpush.bf16.msra.mxu0 %v520
        %536 = vmatpush.bf16.msra.mxu0 %v519
        %537 = vmatpush.bf16.msra.mxu0 %v518
        %538 = vmatpush.bf16.msra.mxu0 %v517
        %539 = vmatpush.bf16.msra.mxu0 %v516
        %540 = vmatmul.bf16.gmra.mxu0 %v463
        %v541 = vpop.f32.mrf.mxu0
        %v542 = vadd.f32 %v482, %v541
        %v543 = vpop.f32.mrf.mxu0
        %544 = vdwg.mxu0
        %v545 = vmax.f32 %v542, 0.0
        %v546 = vpack.c.bf16 %v545, %v545
        %v547 = vld [vmem:[#allocation8] sm:$0xf]
        %v548 = vld [vmem:[#allocation8 + $0x4] sm:$0xf]
        %v549 = vld [vmem:[#allocation8 + $0x8] sm:$0xf]
        %v550 = vld [vmem:[#allocation8 + $0xc] sm:$0xf]
        %v551 = vld [vmem:[#allocation8 + $0x10] sm:$0xf]
        %v552 = vld [vmem:[#allocation8 + $0x14] sm:$0xf]
        %v553 = vld [vmem:[#allocation8 + $0x18] sm:$0xf]
        %v554 = vld [vmem:[#allocation8 + $0x1c] sm:$0xf]
        %v555 = vld [vmem:[#allocation8 + $0x20] sm:$0xf]
        %v556 = vld [vmem:[#allocation8 + $0x24] sm:$0xf]
        %v557 = vld [vmem:[#allocation8 + $0x28] sm:$0xf]
        %v558 = vld [vmem:[#allocation8 + $0x2c] sm:$0xf]
        %v559 = vld [vmem:[#allocation8 + $0x30] sm:$0xf]
        %v560 = vld [vmem:[#allocation8 + $0x34] sm:$0xf]
        %v561 = vld [vmem:[#allocation8 + $0x38] sm:$0xf]
        %v562 = vld [vmem:[#allocation8 + $0x3c] sm:$0xf]
        %v563 = vld [vmem:[#allocation10] sm:$0x1]
        %v565 = vperm.slane %v563, 0
        %v583 = vunpack.c.l.b16 %v547
        %v584 = vunpack.c.l.b16 %v548
        %v585 = vunpack.c.l.b16 %v549
        %v586 = vunpack.c.l.b16 %v550
        %v587 = vunpack.c.l.b16 %v551
        %v588 = vunpack.c.l.b16 %v552
        %v589 = vunpack.c.l.b16 %v553
        %v590 = vunpack.c.l.b16 %v554
        %v591 = vunpack.c.l.b16 %v555
        %v592 = vunpack.c.l.b16 %v556
        %v593 = vunpack.c.l.b16 %v557
        %v594 = vunpack.c.l.b16 %v558
        %v595 = vunpack.c.l.b16 %v559
        %v596 = vunpack.c.l.b16 %v560
        %v597 = vunpack.c.l.b16 %v561
        %v598 = vunpack.c.l.b16 %v562
        %v599 = vpack.c.b16 %v584, %v583
        %v600 = vpack.c.b16 %v586, %v585
        %v601 = vpack.c.b16 %v588, %v587
        %v602 = vpack.c.b16 %v590, %v589
        %v603 = vpack.c.b16 %v592, %v591
        %v604 = vpack.c.b16 %v594, %v593
        %v605 = vpack.c.b16 %v596, %v595
        %v606 = vpack.c.b16 %v598, %v597
        %615 = vmatpush.bf16.msra.mxu0 %v606
        %616 = vmatpush.bf16.msra.mxu0 %v605
        %617 = vmatpush.bf16.msra.mxu0 %v604
        %618 = vmatpush.bf16.msra.mxu0 %v603
        %619 = vmatpush.bf16.msra.mxu0 %v602
        %620 = vmatpush.bf16.msra.mxu0 %v601
        %621 = vmatpush.bf16.msra.mxu0 %v600
        %622 = vmatpush.bf16.msra.mxu0 %v599
        %623 = vmatmul.bf16.gmra.mxu0 %v546
        %v624 = vpop.f32.mrf.mxu0
        %v625 = vadd.f32 %v565, %v624
        %v626 = vpop.f32.mrf.mxu0
        %627 = vdwg.mxu0
        %v628 = vmax.f32 %v625, 0.0
        %v629 = vpack.c.bf16 %v628, %v628
        %v630 = vld [vmem:[#allocation11] sm:$0xf]
        %v631 = vld [vmem:[#allocation11 + $0x4] sm:$0xf]
        %v632 = vld [vmem:[#allocation11 + $0x8] sm:$0xf]
        %v633 = vld [vmem:[#allocation11 + $0xc] sm:$0xf]
        %v634 = vld [vmem:[#allocation11 + $0x10] sm:$0xf]
        %v635 = vld [vmem:[#allocation11 + $0x14] sm:$0xf]
        %v636 = vld [vmem:[#allocation11 + $0x18] sm:$0xf]
        %v637 = vld [vmem:[#allocation11 + $0x1c] sm:$0xf]
        %v638 = vld [vmem:[#allocation11 + $0x20] sm:$0xf]
        %v639 = vld [vmem:[#allocation11 + $0x24] sm:$0xf]
        %v640 = vld [vmem:[#allocation11 + $0x28] sm:$0xf]
        %v641 = vld [vmem:[#allocation11 + $0x2c] sm:$0xf]
        %v642 = vld [vmem:[#allocation11 + $0x30] sm:$0xf]
        %v643 = vld [vmem:[#allocation11 + $0x34] sm:$0xf]
        %v644 = vld [vmem:[#allocation11 + $0x38] sm:$0xf]
        %v645 = vld [vmem:[#allocation11 + $0x3c] sm:$0xf]
        %v646 = vld [vmem:[%s8] sm:$0x1]
        %v648 = vperm.slane %v646, 0
        %v666 = vunpack.c.l.b16 %v630
        %v667 = vunpack.c.l.b16 %v631
        %v668 = vunpack.c.l.b16 %v632
        %v669 = vunpack.c.l.b16 %v633
        %v670 = vunpack.c.l.b16 %v634
        %v671 = vunpack.c.l.b16 %v635
        %v672 = vunpack.c.l.b16 %v636
        %v673 = vunpack.c.l.b16 %v637
        %v674 = vunpack.c.l.b16 %v638
        %v675 = vunpack.c.l.b16 %v639
        %v676 = vunpack.c.l.b16 %v640
        %v677 = vunpack.c.l.b16 %v641
        %v678 = vunpack.c.l.b16 %v642
        %v679 = vunpack.c.l.b16 %v643
        %v680 = vunpack.c.l.b16 %v644
        %v681 = vunpack.c.l.b16 %v645
        %v682 = vpack.c.b16 %v667, %v666
        %v683 = vpack.c.b16 %v669, %v668
        %v684 = vpack.c.b16 %v671, %v670
        %v685 = vpack.c.b16 %v673, %v672
        %v686 = vpack.c.b16 %v675, %v674
        %v687 = vpack.c.b16 %v677, %v676
        %v688 = vpack.c.b16 %v679, %v678
        %v689 = vpack.c.b16 %v681, %v680
        %698 = vmatpush.bf16.msra.mxu0 %v689
        %699 = vmatpush.bf16.msra.mxu0 %v688
        %700 = vmatpush.bf16.msra.mxu0 %v687
        %701 = vmatpush.bf16.msra.mxu0 %v686
        %702 = vmatpush.bf16.msra.mxu0 %v685
        %703 = vmatpush.bf16.msra.mxu0 %v684
        %704 = vmatpush.bf16.msra.mxu0 %v683
        %705 = vmatpush.bf16.msra.mxu0 %v682
        %706 = vmatmul.bf16.gmra.mxu0 %v629
        %v707 = vpop.f32.mrf.mxu0
        %v708 = vadd.f32 %v648, %v707
        %v709 = vpop.f32.mrf.mxu0
        %710 = vdwg.mxu0
        %v711 = vadd.f32 %v462, %v708
        %712 = vst [vmem:[%s428] sm:$0xff] %v711
        %s713 = sand.u32 %s231, 1
        %s714 = scalar_lea.sflag [#allocation4], %s713
        %s715 = sand.u32 %s231, 1
        %s716 = smul.addr %s715, 8
        %s717 = scalar_lea.vmem [#allocation13], %s716
        // Predicated region
        $region81: #{ipa_transition.1} parent=55 // pred_check
          %p718 = pneg %p241
        $region82: #{ipa_transition.1} parent=55 // pred_check_branch
          %720 = sbr.rel (%p718) target = $region84
        $region83: #{ipa_transition.1} parent=55 // pred_region
          %722 = vsyncadd %s714, 0
          %s723 = smul.addr %s29, 8
          %s724 = scalar_lea.hbm %s9, %s723
          %s726 = sshll.u32 %s717, 4
          %s727 = int_to_ptr.vmem [resolvable:$true] %s726
          %s728 = sshll.u32 %s724, 4
          %s729 = int_to_ptr.hbm [resolvable:$true] %s728
          %731 = dma.vmem_to_hbm [thread:$0]  %s727, 128, %s729, %s714
        $region84: #{ipa_transition.1} parent=55 // pred_fallthru
          _
      $region56: #{ipa_transition.1} parent=5 // pred_fallthru
        _
      %p732 = scmp.le.s32.totalorder 2, %s24
      // Predicated region
      $region85: #{ipa_transition.1} parent=5 // pred_check
        %p733 = pneg %p732
      $region86: #{ipa_transition.1} parent=5 // pred_check_branch
        %735 = sbr.rel (%p733) target = $region88
      $region87: #{ipa_transition.1} parent=5 // pred_region
        %s736 = ssub.s32 %s24, 2
        // Predicated region
        $region89: #{ipa_transition.1} parent=87 // pred_check
          %p737 = pneg %p247
        $region90: #{ipa_transition.1} parent=87 // pred_check_branch
          %739 = sbr.rel (%p737) target = $region92
        $region91: #{ipa_transition.1} parent=87 // pred_region
          %s740 = sand.u32 %s232, 1
          %s741 = scalar_lea.sflag [#allocation4], %s740
          %s742 = sand.u32 %s232, 1
          %s743 = smul.addr %s742, 8
          %s744 = scalar_lea.vmem [#allocation13], %s743
          %746 = dma.done %s741, 128
        $region92: #{ipa_transition.1} parent=87 // pred_fallthru
          _
      $region88: #{ipa_transition.1} parent=5 // pred_fallthru
        _
    $region6: #{ipa_transition.1} parent=1 // loop_footer
      %s28 = sadd.s32 1, %s24
    $region7: #{ipa_transition.1} parent=1 // loop_footer_branch
      %23 = sbr.rel target = $region3
    $region8: #{ipa_transition.1} parent=1 // loop_exit
      _
    %747 = vsyncpa [#allocation3], 1
    %s748 = scalar_lea.sflag [#allocation3], 1
    %749 = vsyncpa %s748, 1
    %750 = vsyncpa [#allocation6], 1
    %751 = vsyncpa [#allocation9], 1
    %752 = vsyncpa [#allocation12], 1
    %753 = vsyncpa [#allocation4], 1
    %s754 = scalar_lea.sflag [#allocation4], 1
    %755 = vsyncpa %s754, 1

</llo_original>
